<compile_context>
chip_gen: v7x
topology: tpu7x:2x2x1
jax: 0.10.0
libtpu: 0.0.40
codegen_flags: <defaults>
</compile_context>

<pallas_src>
import functools

import jax
import jax.numpy as jnp
from jax.experimental import pallas as pl
from jax.experimental.pallas import tpu as pltpu


_LANE = 128      # TPU lane width: output is padded to this for unmasked stores.
_SUBLANE = 8     # f32 sublane granularity for the batch (second-minor) axis.


def _leaky_relu(h, negative_slope=0.1):
    return jnp.where(h >= 0, h, negative_slope * h)


def _round_up(n, m):
    return ((n + m - 1) // m) * m


def mlp_kernel(x_ref,
               w1_ref, b1_ref,
               w2_ref, b2_ref,
               w3_ref, b3_ref,
               w4_ref, b4_ref,
               o_ref):
    """Fused SimpleNN eval forward: 4 matmuls + bias, 3 LeakyReLU(0.1).

    BatchNorm scale/shift is already folded into w2/b2, w3/b3, w4/b4 by the
    wrapper; the final weight is zero-padded to a 128-wide class dim so the
    output store is lane-dense.
    """
    x = x_ref[...].astype(jnp.float32)
    h = _leaky_relu(
        jnp.dot(x, w1_ref[...], preferred_element_type=jnp.float32) + b1_ref[...])
    h = _leaky_relu(
        jnp.dot(h, w2_ref[...], preferred_element_type=jnp.float32) + b2_ref[...])
    h = _leaky_relu(
        jnp.dot(h, w3_ref[...], preferred_element_type=jnp.float32) + b3_ref[...])
    out = jnp.dot(h, w4_ref[...], preferred_element_type=jnp.float32) + b4_ref[...]
    o_ref[...] = out.astype(o_ref.dtype)


def fold_params(params, *, lane_pad=_LANE):
    """Fold BN scale/shift into the next layer and lane-pad the classifier."""
    (w1, b1, s1, t1, w2, b2, s2, t2, w3, b3, s3, t3, w4, b4) = params
    # (leaky * s + t) @ W + b == leaky @ (s^T * W) + (t @ W + b)
    w2f = s1.reshape(-1, 1) * w2
    b2f = t1 @ w2 + b2
    w3f = s2.reshape(-1, 1) * w3
    b3f = t2 @ w3 + b3
    w4f = s3.reshape(-1, 1) * w4
    b4f = t3 @ w4 + b4
    # Zero-pad class dim up to a full 128-lane block for an unmasked output store.
    nc = w4f.shape[1]
    pad = _round_up(nc, lane_pad) - nc
    w4f = jnp.pad(w4f, ((0, 0), (0, pad)))
    b4f = jnp.pad(b4f, ((0, 0), (0, pad)))
    return (w1, b1, w2f, b2f, w3f, b3f, w4f, b4f)


def simple_nn_forward(x, folded_params, *, num_classes, batch_tile=256):
    """Fused SimpleNN forward via a single pallas_call, tiled over batch.

    `folded_params` must come from fold_params(). For small B the whole batch
    runs in one grid step; for large B use batch_tile multiples of 256
    (v6e/v7x MXU) or 128 (v5e).
    """
    (w1, b1, w2, b2, w3, b3, w4, b4) = folded_params
    B, input_size = x.shape
    hidden = w1.shape[1]
    half = w3.shape[1]
    out_padded = w4.shape[1]

    # Fewer, fatter grid steps: cap the tile at the (8-aligned) batch size,
    # then pad the batch so it divides evenly (padded rows are sliced off).
    bt = min(batch_tile, _round_up(B, _SUBLANE))
    bt = _round_up(bt, _SUBLANE)
    b_pad = _round_up(B, bt)
    if b_pad != B:
        x = jnp.pad(x, ((0, b_pad - B), (0, 0)))

    def const_spec(shape):
        # Grid-invariant index_map: the block is DMA'd once and revisited.
        return pl.BlockSpec(shape, lambda i: (0, 0))

    in_specs = [
        pl.BlockSpec((bt, input_size), lambda i: (i, 0)),        # x tile
        const_spec((input_size, hidden)), const_spec((1, hidden)),
        const_spec((hidden, hidden)), const_spec((1, hidden)),
        const_spec((hidden, half)), const_spec((1, half)),
        const_spec((half, out_padded)), const_spec((1, out_padded)),
    ]
    out_spec = pl.BlockSpec((bt, out_padded), lambda i: (i, 0))

    out = pl.pallas_call(
        mlp_kernel,
        out_shape=jax.ShapeDtypeStruct((b_pad, out_padded), jnp.float32),
        grid_spec=pltpu.PrefetchScalarGridSpec(
            num_scalar_prefetch=0,
            grid=(b_pad // bt,),
            in_specs=in_specs,
            out_specs=out_spec,
        ),
        compiler_params=pltpu.CompilerParams(
            dimension_semantics=("parallel",),
        ),
    )(x, w1, b1, w2, b2, w3, b3, w4, b4)

    # Strip batch padding and the lane padding of the class dim.
    return out[:B, :num_classes]


def init_params(key, input_size, hidden_size, num_classes):
    """Deterministic parameter init mirroring SimpleNN.__init__ shapes."""
    half = hidden_size // 2
    keys = jax.random.split(key, 20)   # 3x(2 linear + 4 bn) + 2 linear = 20 keys
    kit = iter(keys)

    def linear(fan_in, fan_out):
        # PyTorch Linear stores (out, in); we build (in, out) directly.
        bound = 1.0 / jnp.sqrt(jnp.float32(fan_in))
        w = jax.random.uniform(next(kit), (fan_in, fan_out), jnp.float32, -bound, bound)
        b = jax.random.uniform(next(kit), (1, fan_out), jnp.float32, -bound, bound)
        return w, b

    def bn_fold(feat, eps=1e-5):
        gamma = 1.0 + 0.1 * jax.random.normal(next(kit), (1, feat), jnp.float32)
        beta = 0.1 * jax.random.normal(next(kit), (1, feat), jnp.float32)
        running_mean = 0.1 * jax.random.normal(next(kit), (1, feat), jnp.float32)
        running_var = jnp.abs(1.0 + 0.1 * jax.random.normal(next(kit), (1, feat), jnp.float32))
        scale = gamma / jnp.sqrt(running_var + eps)
        shift = beta - running_mean * scale
        return scale, shift

    w1, b1 = linear(input_size, hidden_size)
    s1, t1 = bn_fold(hidden_size)
    w2, b2 = linear(hidden_size, hidden_size)
    s2, t2 = bn_fold(hidden_size)
    w3, b3 = linear(hidden_size, half)
    s3, t3 = bn_fold(half)
    w4, b4 = linear(half, num_classes)

    return (w1, b1, s1, t1, w2, b2, s2, t2, w3, b3, s3, t3, w4, b4)


def reference_forward(x, params):
    """Pure-JAX reference of the same eval-mode forward (unfolded params)."""
    (w1, b1, s1, t1, w2, b2, s2, t2, w3, b3, s3, t3, w4, b4) = params
    h = _leaky_relu(x @ w1 + b1) * s1 + t1
    h = _leaky_relu(h @ w2 + b2) * s2 + t2
    h = _leaky_relu(h @ w3 + b3) * s3 + t3
    return h @ w4 + b4


if __name__ == "__main__":
    # Wholesale-customers-like sizes: 8 input features, hidden 32, 3 classes.
    batch, input_size, hidden_size, num_classes = 16, 8, 32, 3

    key = jax.random.PRNGKey(0)
    kx, kp = jax.random.split(key)
    x = jax.random.normal(kx, (batch, input_size), jnp.float32)
    raw_params = init_params(kp, input_size, hidden_size, num_classes)
    folded = fold_params(raw_params)

    fwd = jax.jit(
        lambda xx, pp: simple_nn_forward(
            xx, pp, num_classes=num_classes, batch_tile=256))
    out = jax.block_until_ready(fwd(x, folded))

    ref = reference_forward(x, raw_params)
    assert out.shape == (batch, num_classes)
    assert jnp.allclose(out, ref, atol=1e-4, rtol=1e-3)

    print("KERNEL_OK")
</pallas_src>

<mosaic_0001>
module attributes {stable_mosaic.version = 11 : i64} {
  func.func @mlp_kernel(%arg0: i32, %arg1: memref<16x8xf32, #tpu.memory_space<vmem>>, %arg2: memref<8x32xf32, #tpu.memory_space<vmem>>, %arg3: memref<1x32xf32, #tpu.memory_space<vmem>>, %arg4: memref<32x32xf32, #tpu.memory_space<vmem>>, %arg5: memref<1x32xf32, #tpu.memory_space<vmem>>, %arg6: memref<32x16xf32, #tpu.memory_space<vmem>>, %arg7: memref<1x16xf32, #tpu.memory_space<vmem>>, %arg8: memref<16x128xf32, #tpu.memory_space<vmem>>, %arg9: memref<1x128xf32, #tpu.memory_space<vmem>>, %arg10: memref<16x128xf32, #tpu.memory_space<vmem>>) attributes {dimension_semantics = [#tpu.dimension_semantics<parallel>], iteration_bounds = array<i64: 1>, scalar_prefetch = 0 : i64, scratch_operands = 0 : i64, tpu.core_type = #tpu.core_type<tc>, window_params = [{transform_indices = @transform_0, window_bounds = array<i64: 16, 8>}, {pipeline_mode = #tpu.pipeline_mode<synchronous>, transform_indices = @transform_1, window_bounds = array<i64: 8, 32>}, {pipeline_mode = #tpu.pipeline_mode<synchronous>, transform_indices = @transform_2, window_bounds = array<i64: 1, 32>}, {pipeline_mode = #tpu.pipeline_mode<synchronous>, transform_indices = @transform_3, window_bounds = array<i64: 32, 32>}, {pipeline_mode = #tpu.pipeline_mode<synchronous>, transform_indices = @transform_4, window_bounds = array<i64: 1, 32>}, {pipeline_mode = #tpu.pipeline_mode<synchronous>, transform_indices = @transform_5, window_bounds = array<i64: 32, 16>}, {pipeline_mode = #tpu.pipeline_mode<synchronous>, transform_indices = @transform_6, window_bounds = array<i64: 1, 16>}, {pipeline_mode = #tpu.pipeline_mode<synchronous>, transform_indices = @transform_7, window_bounds = array<i64: 16, 128>}, {pipeline_mode = #tpu.pipeline_mode<synchronous>, transform_indices = @transform_8, window_bounds = array<i64: 1, 128>}, {transform_indices = @transform_9, window_bounds = array<i64: 16, 128>}]} {
    %c0 = arith.constant 0 : index
    %c0_0 = arith.constant 0 : index
    %0 = vector.load %arg1[%c0, %c0_0] : memref<16x8xf32, #tpu.memory_space<vmem>>, vector<16x8xf32>
    %c0_1 = arith.constant 0 : index
    %c0_2 = arith.constant 0 : index
    %1 = vector.load %arg2[%c0_1, %c0_2] : memref<8x32xf32, #tpu.memory_space<vmem>>, vector<8x32xf32>
    %cst = arith.constant dense<0.000000e+00> : vector<16x32xf32>
    %2 = tpu.matmul %0, %1, %cst {dimension_numbers = #tpu.dot_dimension_numbers<[1], [0], [0], [1], [0, 0, 1, 1], [], []>} : vector<16x8xf32>, vector<8x32xf32>, vector<16x32xf32> -> vector<16x32xf32>
    %c0_3 = arith.constant 0 : index
    %c0_4 = arith.constant 0 : index
    %3 = vector.load %arg3[%c0_3, %c0_4] : memref<1x32xf32, #tpu.memory_space<vmem>>, vector<1x32xf32>
    %4 = vector.broadcast %3 : vector<1x32xf32> to vector<16x32xf32>
    %5 = arith.addf %2, %4 : vector<16x32xf32>
    %cst_5 = arith.constant 0.000000e+00 : f32
    %6 = vector.broadcast %cst_5 : f32 to vector<16x32xf32>
    %7 = arith.cmpf oge, %5, %6 : vector<16x32xf32>
    %cst_6 = arith.constant 1.000000e-01 : f32
    %8 = vector.broadcast %cst_6 : f32 to vector<16x32xf32>
    %9 = arith.mulf %8, %5 : vector<16x32xf32>
    %10 = arith.select %7, %5, %9 : vector<16x32xi1>, vector<16x32xf32>
    %c0_7 = arith.constant 0 : index
    %c0_8 = arith.constant 0 : index
    %11 = vector.load %arg4[%c0_7, %c0_8] : memref<32x32xf32, #tpu.memory_space<vmem>>, vector<32x32xf32>
    %cst_9 = arith.constant dense<0.000000e+00> : vector<16x32xf32>
    %12 = tpu.matmul %10, %11, %cst_9 {dimension_numbers = #tpu.dot_dimension_numbers<[1], [0], [0], [1], [0, 0, 1, 1], [], []>} : vector<16x32xf32>, vector<32x32xf32>, vector<16x32xf32> -> vector<16x32xf32>
    %c0_10 = arith.constant 0 : index
    %c0_11 = arith.constant 0 : index
    %13 = vector.load %arg5[%c0_10, %c0_11] : memref<1x32xf32, #tpu.memory_space<vmem>>, vector<1x32xf32>
    %14 = vector.broadcast %13 : vector<1x32xf32> to vector<16x32xf32>
    %15 = arith.addf %12, %14 : vector<16x32xf32>
    %cst_12 = arith.constant 0.000000e+00 : f32
    %16 = vector.broadcast %cst_12 : f32 to vector<16x32xf32>
    %17 = arith.cmpf oge, %15, %16 : vector<16x32xf32>
    %cst_13 = arith.constant 1.000000e-01 : f32
    %18 = vector.broadcast %cst_13 : f32 to vector<16x32xf32>
    %19 = arith.mulf %18, %15 : vector<16x32xf32>
    %20 = arith.select %17, %15, %19 : vector<16x32xi1>, vector<16x32xf32>
    %c0_14 = arith.constant 0 : index
    %c0_15 = arith.constant 0 : index
    %21 = vector.load %arg6[%c0_14, %c0_15] : memref<32x16xf32, #tpu.memory_space<vmem>>, vector<32x16xf32>
    %cst_16 = arith.constant dense<0.000000e+00> : vector<16x16xf32>
    %22 = tpu.matmul %20, %21, %cst_16 {dimension_numbers = #tpu.dot_dimension_numbers<[1], [0], [0], [1], [0, 0, 1, 1], [], []>} : vector<16x32xf32>, vector<32x16xf32>, vector<16x16xf32> -> vector<16x16xf32>
    %c0_17 = arith.constant 0 : index
    %c0_18 = arith.constant 0 : index
    %23 = vector.load %arg7[%c0_17, %c0_18] : memref<1x16xf32, #tpu.memory_space<vmem>>, vector<1x16xf32>
    %24 = vector.broadcast %23 : vector<1x16xf32> to vector<16x16xf32>
    %25 = arith.addf %22, %24 : vector<16x16xf32>
    %cst_19 = arith.constant 0.000000e+00 : f32
    %26 = vector.broadcast %cst_19 : f32 to vector<16x16xf32>
    %27 = arith.cmpf oge, %25, %26 : vector<16x16xf32>
    %cst_20 = arith.constant 1.000000e-01 : f32
    %28 = vector.broadcast %cst_20 : f32 to vector<16x16xf32>
    %29 = arith.mulf %28, %25 : vector<16x16xf32>
    %30 = arith.select %27, %25, %29 : vector<16x16xi1>, vector<16x16xf32>
    %c0_21 = arith.constant 0 : index
    %c0_22 = arith.constant 0 : index
    %31 = vector.load %arg8[%c0_21, %c0_22] : memref<16x128xf32, #tpu.memory_space<vmem>>, vector<16x128xf32>
    %cst_23 = arith.constant dense<0.000000e+00> : vector<16x128xf32>
    %32 = tpu.matmul %30, %31, %cst_23 {dimension_numbers = #tpu.dot_dimension_numbers<[1], [0], [0], [1], [0, 0, 1, 1], [], []>} : vector<16x16xf32>, vector<16x128xf32>, vector<16x128xf32> -> vector<16x128xf32>
    %c0_24 = arith.constant 0 : index
    %c0_25 = arith.constant 0 : index
    %33 = vector.load %arg9[%c0_24, %c0_25] : memref<1x128xf32, #tpu.memory_space<vmem>>, vector<1x128xf32>
    %34 = vector.broadcast %33 : vector<1x128xf32> to vector<16x128xf32>
    %35 = arith.addf %32, %34 : vector<16x128xf32>
    %c0_26 = arith.constant 0 : index
    %c0_27 = arith.constant 0 : index
    %36 = vector.load %arg10[%c0_26, %c0_27] : memref<16x128xf32, #tpu.memory_space<vmem>>, vector<16x128xf32>
    tpu.vector_store %arg10[%c0_26, %c0_27], %35 {strides = array<i32>} : memref<16x128xf32, #tpu.memory_space<vmem>>, vector<16x128xf32>,
    return
  }
  func.func @transform_0(%arg0: i32) -> (i32, i32) {
    %c0_i32 = arith.constant 0 : i32
    %c0_i32_0 = arith.constant 0 : i32
    return %arg0, %c0_i32 : i32, i32
  }
  func.func @transform_1(%arg0: i32) -> (i32, i32) {
    %c0_i32 = arith.constant 0 : i32
    %c0_i32_0 = arith.constant 0 : i32
    %c0_i32_1 = arith.constant 0 : i32
    return %c0_i32, %c0_i32_0 : i32, i32
  }
  func.func @transform_2(%arg0: i32) -> (i32, i32) {
    %c0_i32 = arith.constant 0 : i32
    %c0_i32_0 = arith.constant 0 : i32
    %c0_i32_1 = arith.constant 0 : i32
    return %c0_i32, %c0_i32_0 : i32, i32
  }
  func.func @transform_3(%arg0: i32) -> (i32, i32) {
    %c0_i32 = arith.constant 0 : i32
    %c0_i32_0 = arith.constant 0 : i32
    %c0_i32_1 = arith.constant 0 : i32
    return %c0_i32, %c0_i32_0 : i32, i32
  }
  func.func @transform_4(%arg0: i32) -> (i32, i32) {
    %c0_i32 = arith.constant 0 : i32
    %c0_i32_0 = arith.constant 0 : i32
    %c0_i32_1 = arith.constant 0 : i32
    return %c0_i32, %c0_i32_0 : i32, i32
  }
  func.func @transform_5(%arg0: i32) -> (i32, i32) {
    %c0_i32 = arith.constant 0 : i32
    %c0_i32_0 = arith.constant 0 : i32
    %c0_i32_1 = arith.constant 0 : i32
    return %c0_i32, %c0_i32_0 : i32, i32
  }
  func.func @transform_6(%arg0: i32) -> (i32, i32) {
    %c0_i32 = arith.constant 0 : i32
    %c0_i32_0 = arith.constant 0 : i32
    %c0_i32_1 = arith.constant 0 : i32
    return %c0_i32, %c0_i32_0 : i32, i32
  }
  func.func @transform_7(%arg0: i32) -> (i32, i32) {
    %c0_i32 = arith.constant 0 : i32
    %c0_i32_0 = arith.constant 0 : i32
    %c0_i32_1 = arith.constant 0 : i32
    return %c0_i32, %c0_i32_0 : i32, i32
  }
  func.func @transform_8(%arg0: i32) -> (i32, i32) {
    %c0_i32 = arith.constant 0 : i32
    %c0_i32_0 = arith.constant 0 : i32
    %c0_i32_1 = arith.constant 0 : i32
    return %c0_i32, %c0_i32_0 : i32, i32
  }
  func.func @transform_9(%arg0: i32) -> (i32, i32) {
    %c0_i32 = arith.constant 0 : i32
    %c0_i32_0 = arith.constant 0 : i32
    return %arg0, %c0_i32 : i32, i32
  }
}

</mosaic_0001>

<llo_original>
// kernel: _lambda_.1
$region0: #{_lambda_.1}
  #allocation0 [shape = 'u32[]', space=smem, size = 0x4, offset = 0x4, fixed_abs, tag = 'smem constant byte address 0x4 - core index']
  #allocation1 [shape = 'u32[144,128]{1,0:T(1,128)}', space=vmem, size = 0x12000, scoped, tag = 'internal scratch']
  %s0 = inlined_call_operand.vmem [shape: f32[16,8], index: 0, kind: input, shape index: {}]
  %s1 = inlined_call_operand.vmem [shape: f32[8,32], index: 1, kind: input, shape index: {}]
  %s2 = inlined_call_operand.vmem [shape: f32[1,32], index: 2, kind: input, shape index: {}]
  %s3 = inlined_call_operand.vmem [shape: f32[32,32], index: 3, kind: input, shape index: {}]
  %s4 = inlined_call_operand.vmem [shape: f32[1,32], index: 4, kind: input, shape index: {}]
  %s5 = inlined_call_operand.vmem [shape: f32[32,16], index: 5, kind: input, shape index: {}]
  %s6 = inlined_call_operand.vmem [shape: f32[1,16], index: 6, kind: input, shape index: {}]
  %s7 = inlined_call_operand.vmem [shape: f32[16,128], index: 7, kind: input, shape index: {}]
  %s8 = inlined_call_operand.vmem [shape: f32[1,128], index: 8, kind: input, shape index: {}]
  %s9 = inlined_call_operand.vmem [shape: f32[16,128], index: 9, kind: output, shape index: {}]
  %s10 = sld [smem:[#allocation0]]
  $region46: #{_lambda_.1} parent=0
    _
  %s12 = ssub.s32 1, %s10
  %s13 = scalar_select 0, %s12, %s10
  // Predicated region
  $region2: #{_lambda_.1} parent=0 // pred_check
    _
  $region3: #{_lambda_.1} parent=0 // pred_check_branch
    %15 = sbr.rel (0) target = $region5
  $region4: #{_lambda_.1} parent=0 // pred_region
    _
  $region5: #{_lambda_.1} parent=0 // pred_fallthru
    _
  // Predicated region
  $region6: #{_lambda_.1} parent=0 // pred_check
    _
  $region7: #{_lambda_.1} parent=0 // pred_check_branch
    %17 = sbr.rel (0) target = $region9
  $region8: #{_lambda_.1} parent=0 // pred_region
    _
  $region9: #{_lambda_.1} parent=0 // pred_fallthru
    _
  // Predicated region
  $region10: #{_lambda_.1} parent=0 // pred_check
    _
  $region11: #{_lambda_.1} parent=0 // pred_check_branch
    %19 = sbr.rel (0) target = $region13
  $region12: #{_lambda_.1} parent=0 // pred_region
    _
  $region13: #{_lambda_.1} parent=0 // pred_fallthru
    _
  // Predicated region
  $region14: #{_lambda_.1} parent=0 // pred_check
    _
  $region15: #{_lambda_.1} parent=0 // pred_check_branch
    %21 = sbr.rel (0) target = $region17
  $region16: #{_lambda_.1} parent=0 // pred_region
    _
  $region17: #{_lambda_.1} parent=0 // pred_fallthru
    _
  // Predicated region
  $region18: #{_lambda_.1} parent=0 // pred_check
    _
  $region19: #{_lambda_.1} parent=0 // pred_check_branch
    %23 = sbr.rel (0) target = $region21
  $region20: #{_lambda_.1} parent=0 // pred_region
    _
  $region21: #{_lambda_.1} parent=0 // pred_fallthru
    _
  // Predicated region
  $region22: #{_lambda_.1} parent=0 // pred_check
    _
  $region23: #{_lambda_.1} parent=0 // pred_check_branch
    %25 = sbr.rel (0) target = $region25
  $region24: #{_lambda_.1} parent=0 // pred_region
    _
  $region25: #{_lambda_.1} parent=0 // pred_fallthru
    _
  // Predicated region
  $region26: #{_lambda_.1} parent=0 // pred_check
    _
  $region27: #{_lambda_.1} parent=0 // pred_check_branch
    %27 = sbr.rel (0) target = $region29
  $region28: #{_lambda_.1} parent=0 // pred_region
    _
  $region29: #{_lambda_.1} parent=0 // pred_fallthru
    _
  // Predicated region
  $region30: #{_lambda_.1} parent=0 // pred_check
    _
  $region31: #{_lambda_.1} parent=0 // pred_check_branch
    %29 = sbr.rel (0) target = $region33
  $region32: #{_lambda_.1} parent=0 // pred_region
    _
  $region33: #{_lambda_.1} parent=0 // pred_fallthru
    _
  // Predicated region
  $region34: #{_lambda_.1} parent=0 // pred_check
    _
  $region35: #{_lambda_.1} parent=0 // pred_check_branch
    %31 = sbr.rel (0) target = $region37
  $region36: #{_lambda_.1} parent=0 // pred_region
    _
  $region37: #{_lambda_.1} parent=0 // pred_fallthru
    _
  %v32 = vld [vmem:[%s0] sm:$0xff]
  %v33 = vld [vmem:[%s0 + $0x8] sm:$0xff]
  %v34 = vld [vmem:[%s1] sm:$0xff]
  %v35 = vld [vmem:[%s2] sm:$0x1]
  %v37 = vlaneseq
  %v38 = vshrl.u32 %v37, 7
  %v39 = vsub.s32 0, %v38
  %v40 = vrot.slane %v35, %v39
  %vm42 = vcmask 64512
  %v44 = vsel %vm42, %v32, 0
  %v47 = vsel %vm42, %v33, 0
  %49 = vmatprep.subr.mxu0 0.0
  %50 = vmatpush1.msra.mxu0 %v34
  %51 = vmatprep.subr.mxu0 0.0
  %52 = vmatpush1.msra.mxu0 0.0
  %53 = vmatprep.subr.mxu0 0.0
  %54 = vmatpush1.msra.mxu0 0.0
  %55 = vmatprep.subr.mxu0 0.0
  %56 = vmatpush1.msra.mxu0 0.0
  %57 = vmatprep.subr.mxu0 0.0
  %58 = vmatpush1.msra.mxu0 0.0
  %59 = vmatprep.subr.mxu0 0.0
  %60 = vmatpush1.msra.mxu0 0.0
  %61 = vmatprep.subr.mxu0 0.0
  %62 = vmatpush1.msra.mxu0 0.0
  %63 = vmatprep.subr.mxu0 0.0
  %64 = vmatpush1.msra.mxu0 0.0
  %65 = vmatprep.subr.mxu0 0.0
  %66 = vmatpush1.msra.mxu0 0.0
  %67 = vmatprep.subr.mxu0 0.0
  %68 = vmatpush1.msra.mxu0 0.0
  %69 = vmatprep.subr.mxu0 0.0
  %70 = vmatpush1.msra.mxu0 0.0
  %71 = vmatprep.subr.mxu0 0.0
  %72 = vmatpush1.msra.mxu0 0.0
  %73 = vmatprep.subr.mxu0 0.0
  %74 = vmatpush1.msra.mxu0 0.0
  %75 = vmatprep.subr.mxu0 0.0
  %76 = vmatpush1.msra.mxu0 0.0
  %77 = vmatprep.subr.mxu0 0.0
  %78 = vmatpush1.msra.mxu0 0.0
  %79 = vmatprep.subr.mxu0 0.0
  %80 = vmatpush1.msra.mxu0 0.0
  %81 = vmatprep.subr.mxu0 0.0
  %82 = vmatpush1.msra.mxu0 0.0
  %83 = vmatprep.subr.mxu0 0.0
  %84 = vmatpush1.msra.mxu0 0.0
  %85 = vmatprep.subr.mxu0 0.0
  %86 = vmatpush1.msra.mxu0 0.0
  %87 = vmatprep.subr.mxu0 0.0
  %88 = vmatpush1.msra.mxu0 0.0
  %89 = vmatprep.subr.mxu0 0.0
  %90 = vmatpush1.msra.mxu0 0.0
  %91 = vmatprep.subr.mxu0 0.0
  %92 = vmatpush1.msra.mxu0 0.0
  %93 = vmatprep.subr.mxu0 0.0
  %94 = vmatpush1.msra.mxu0 0.0
  %95 = vmatprep.subr.mxu0 0.0
  %96 = vmatpush1.msra.mxu0 0.0
  %97 = vmatprep.subr.mxu0 0.0
  %98 = vmatpush1.msra.mxu0 0.0
  %99 = vmatprep.subr.mxu0 0.0
  %100 = vmatpush1.msra.mxu0 0.0
  %101 = vmatprep.subr.mxu0 0.0
  %102 = vmatpush1.msra.mxu0 0.0
  %103 = vmatprep.subr.mxu0 0.0
  %104 = vmatpush1.msra.mxu0 0.0
  %105 = vmatprep.subr.mxu0 0.0
  %106 = vmatpush1.msra.mxu0 0.0
  %107 = vmatprep.subr.mxu0 0.0
  %108 = vmatpush1.msra.mxu0 0.0
  %109 = vmatprep.subr.mxu0 0.0
  %110 = vmatpush1.msra.mxu0 0.0
  %111 = vmatprep.subr.mxu0 0.0
  %112 = vmatpush1.msra.mxu0 0.0
  %113 = vmatprep.mubr.f32.mxu0 0.0
  %114 = vmatmul.mubr.f32.gmra.mrb[0].mxu0 %v44
  %v115 = vpop.f32.mrb[0].mxu0
  %v116 = vadd.f32 %v40, %v115
  %v117 = vpop.f32.mrb[0].mxu0
  %118 = vmatprep.mubr.f32.mxu0 0.0
  %119 = vmatmul.mubr.f32.gmra.mrb[0].mxu0 %v47
  %v120 = vpop.f32.mrb[0].mxu0
  %v121 = vadd.f32 %v40, %v120
  %v122 = vpop.f32.mrb[0].mxu0
  %123 = vdwg.mxu0
  %vm124 = vcmp.ge.f32.partialorder %v116, 0.0
  %vm125 = vcmp.ge.f32.partialorder %v121, 0.0
  %v126 = vmul.f32 %v116, 0.1
  %v127 = vmul.f32 %v121, 0.1
  %v128 = vsel %vm124, %v116, %v126
  %v129 = vsel %vm125, %v121, %v127
  %v130 = vld [vmem:[%s3] sm:$0xff]
  %v131 = vld [vmem:[%s3 + $0x8] sm:$0xff]
  %v132 = vld [vmem:[%s3 + $0x10] sm:$0xff]
  %v133 = vld [vmem:[%s3 + $0x18] sm:$0xff]
  %v134 = vld [vmem:[%s4] sm:$0x1]
  %v136 = vlaneseq
  %v137 = vshrl.u32 %v136, 7
  %v138 = vsub.s32 0, %v137
  %v139 = vrot.slane %v134, %v138
  %vm141 = vcmask 261120
  %v143 = vsel %vm141, %v128, 0
  %v146 = vsel %vm141, %v129, 0
  %148 = vmatprep.subr.mxu0 0.0
  %149 = vmatpush1.msra.mxu0 %v130
  %150 = vmatprep.subr.mxu0 0.0
  %151 = vmatpush1.msra.mxu0 %v131
  %152 = vmatprep.subr.mxu0 0.0
  %153 = vmatpush1.msra.mxu0 %v132
  %154 = vmatprep.subr.mxu0 0.0
  %155 = vmatpush1.msra.mxu0 %v133
  %156 = vmatprep.subr.mxu0 0.0
  %157 = vmatpush1.msra.mxu0 0.0
  %158 = vmatprep.subr.mxu0 0.0
  %159 = vmatpush1.msra.mxu0 0.0
  %160 = vmatprep.subr.mxu0 0.0
  %161 = vmatpush1.msra.mxu0 0.0
  %162 = vmatprep.subr.mxu0 0.0
  %163 = vmatpush1.msra.mxu0 0.0
  %164 = vmatprep.subr.mxu0 0.0
  %165 = vmatpush1.msra.mxu0 0.0
  %166 = vmatprep.subr.mxu0 0.0
  %167 = vmatpush1.msra.mxu0 0.0
  %168 = vmatprep.subr.mxu0 0.0
  %169 = vmatpush1.msra.mxu0 0.0
  %170 = vmatprep.subr.mxu0 0.0
  %171 = vmatpush1.msra.mxu0 0.0
  %172 = vmatprep.subr.mxu0 0.0
  %173 = vmatpush1.msra.mxu0 0.0
  %174 = vmatprep.subr.mxu0 0.0
  %175 = vmatpush1.msra.mxu0 0.0
  %176 = vmatprep.subr.mxu0 0.0
  %177 = vmatpush1.msra.mxu0 0.0
  %178 = vmatprep.subr.mxu0 0.0
  %179 = vmatpush1.msra.mxu0 0.0
  %180 = vmatprep.subr.mxu0 0.0
  %181 = vmatpush1.msra.mxu0 0.0
  %182 = vmatprep.subr.mxu0 0.0
  %183 = vmatpush1.msra.mxu0 0.0
  %184 = vmatprep.subr.mxu0 0.0
  %185 = vmatpush1.msra.mxu0 0.0
  %186 = vmatprep.subr.mxu0 0.0
  %187 = vmatpush1.msra.mxu0 0.0
  %188 = vmatprep.subr.mxu0 0.0
  %189 = vmatpush1.msra.mxu0 0.0
  %190 = vmatprep.subr.mxu0 0.0
  %191 = vmatpush1.msra.mxu0 0.0
  %192 = vmatprep.subr.mxu0 0.0
  %193 = vmatpush1.msra.mxu0 0.0
  %194 = vmatprep.subr.mxu0 0.0
  %195 = vmatpush1.msra.mxu0 0.0
  %196 = vmatprep.subr.mxu0 0.0
  %197 = vmatpush1.msra.mxu0 0.0
  %198 = vmatprep.subr.mxu0 0.0
  %199 = vmatpush1.msra.mxu0 0.0
  %200 = vmatprep.subr.mxu0 0.0
  %201 = vmatpush1.msra.mxu0 0.0
  %202 = vmatprep.subr.mxu0 0.0
  %203 = vmatpush1.msra.mxu0 0.0
  %204 = vmatprep.subr.mxu0 0.0
  %205 = vmatpush1.msra.mxu0 0.0
  %206 = vmatprep.subr.mxu0 0.0
  %207 = vmatpush1.msra.mxu0 0.0
  %208 = vmatprep.subr.mxu0 0.0
  %209 = vmatpush1.msra.mxu0 0.0
  %210 = vmatprep.subr.mxu0 0.0
  %211 = vmatpush1.msra.mxu0 0.0
  %212 = vmatprep.mubr.f32.mxu0 0.0
  %213 = vmatmul.mubr.f32.gmra.mrb[0].mxu0 %v143
  %v214 = vpop.f32.mrb[0].mxu0
  %v215 = vadd.f32 %v139, %v214
  %v216 = vpop.f32.mrb[0].mxu0
  %217 = vmatprep.mubr.f32.mxu0 0.0
  %218 = vmatmul.mubr.f32.gmra.mrb[0].mxu0 %v146
  %v219 = vpop.f32.mrb[0].mxu0
  %v220 = vadd.f32 %v139, %v219
  %v221 = vpop.f32.mrb[0].mxu0
  %222 = vdwg.mxu0
  %vm223 = vcmp.ge.f32.partialorder %v215, 0.0
  %vm224 = vcmp.ge.f32.partialorder %v220, 0.0
  %v225 = vmul.f32 %v215, 0.1
  %v226 = vmul.f32 %v220, 0.1
  %v227 = vsel %vm223, %v215, %v225
  %v228 = vsel %vm224, %v220, %v226
  %v229 = vld [vmem:[%s5] sm:$0xff]
  %v230 = vld [vmem:[%s5 + $0x8] sm:$0xff]
  %v231 = vld [vmem:[%s5 + $0x10] sm:$0xff]
  %v232 = vld [vmem:[%s5 + $0x18] sm:$0xff]
  %v233 = vld [vmem:[%s6] sm:$0x1]
  %v235 = vlaneseq
  %v236 = vshrl.u32 %v235, 7
  %v237 = vsub.s32 0, %v236
  %v238 = vrot.slane %v233, %v237
  %v241 = vsel %vm141, %v227, 0
  %v244 = vsel %vm141, %v228, 0
  %246 = vmatprep.subr.mxu0 0.0
  %247 = vmatpush1.msra.mxu0 %v229
  %248 = vmatprep.subr.mxu0 0.0
  %249 = vmatpush1.msra.mxu0 %v230
  %250 = vmatprep.subr.mxu0 0.0
  %251 = vmatpush1.msra.mxu0 %v231
  %252 = vmatprep.subr.mxu0 0.0
  %253 = vmatpush1.msra.mxu0 %v232
  %254 = vmatprep.subr.mxu0 0.0
  %255 = vmatpush1.msra.mxu0 0.0
  %256 = vmatprep.subr.mxu0 0.0
  %257 = vmatpush1.msra.mxu0 0.0
  %258 = vmatprep.subr.mxu0 0.0
  %259 = vmatpush1.msra.mxu0 0.0
  %260 = vmatprep.subr.mxu0 0.0
  %261 = vmatpush1.msra.mxu0 0.0
  %262 = vmatprep.subr.mxu0 0.0
  %263 = vmatpush1.msra.mxu0 0.0
  %264 = vmatprep.subr.mxu0 0.0
  %265 = vmatpush1.msra.mxu0 0.0
  %266 = vmatprep.subr.mxu0 0.0
  %267 = vmatpush1.msra.mxu0 0.0
  %268 = vmatprep.subr.mxu0 0.0
  %269 = vmatpush1.msra.mxu0 0.0
  %270 = vmatprep.subr.mxu0 0.0
  %271 = vmatpush1.msra.mxu0 0.0
  %272 = vmatprep.subr.mxu0 0.0
  %273 = vmatpush1.msra.mxu0 0.0
  %274 = vmatprep.subr.mxu0 0.0
  %275 = vmatpush1.msra.mxu0 0.0
  %276 = vmatprep.subr.mxu0 0.0
  %277 = vmatpush1.msra.mxu0 0.0
  %278 = vmatprep.subr.mxu0 0.0
  %279 = vmatpush1.msra.mxu0 0.0
  %280 = vmatprep.subr.mxu0 0.0
  %281 = vmatpush1.msra.mxu0 0.0
  %282 = vmatprep.subr.mxu0 0.0
  %283 = vmatpush1.msra.mxu0 0.0
  %284 = vmatprep.subr.mxu0 0.0
  %285 = vmatpush1.msra.mxu0 0.0
  %286 = vmatprep.subr.mxu0 0.0
  %287 = vmatpush1.msra.mxu0 0.0
  %288 = vmatprep.subr.mxu0 0.0
  %289 = vmatpush1.msra.mxu0 0.0
  %290 = vmatprep.subr.mxu0 0.0
  %291 = vmatpush1.msra.mxu0 0.0
  %292 = vmatprep.subr.mxu0 0.0
  %293 = vmatpush1.msra.mxu0 0.0
  %294 = vmatprep.subr.mxu0 0.0
  %295 = vmatpush1.msra.mxu0 0.0
  %296 = vmatprep.subr.mxu0 0.0
  %297 = vmatpush1.msra.mxu0 0.0
  %298 = vmatprep.subr.mxu0 0.0
  %299 = vmatpush1.msra.mxu0 0.0
  %300 = vmatprep.subr.mxu0 0.0
  %301 = vmatpush1.msra.mxu0 0.0
  %302 = vmatprep.subr.mxu0 0.0
  %303 = vmatpush1.msra.mxu0 0.0
  %304 = vmatprep.subr.mxu0 0.0
  %305 = vmatpush1.msra.mxu0 0.0
  %306 = vmatprep.subr.mxu0 0.0
  %307 = vmatpush1.msra.mxu0 0.0
  %308 = vmatprep.subr.mxu0 0.0
  %309 = vmatpush1.msra.mxu0 0.0
  %310 = vmatprep.mubr.f32.mxu0 0.0
  %311 = vmatmul.mubr.f32.gmra.mrb[0].mxu0 %v241
  %v312 = vpop.f32.mrb[0].mxu0
  %v313 = vadd.f32 %v238, %v312
  %v314 = vpop.f32.mrb[0].mxu0
  %315 = vmatprep.mubr.f32.mxu0 0.0
  %316 = vmatmul.mubr.f32.gmra.mrb[0].mxu0 %v244
  %v317 = vpop.f32.mrb[0].mxu0
  %v318 = vadd.f32 %v238, %v317
  %v319 = vpop.f32.mrb[0].mxu0
  %320 = vdwg.mxu0
  %vm321 = vcmp.ge.f32.partialorder %v313, 0.0
  %vm322 = vcmp.ge.f32.partialorder %v318, 0.0
  %v323 = vmul.f32 %v313, 0.1
  %v324 = vmul.f32 %v318, 0.1
  %v325 = vsel %vm321, %v313, %v323
  %v326 = vsel %vm322, %v318, %v324
  %v327 = vld [vmem:[%s7] sm:$0xff]
  %v328 = vld [vmem:[%s7 + $0x8] sm:$0xff]
  %v329 = vld [vmem:[%s8] sm:$0x1]
  %v331 = vlaneseq
  %v332 = vshrl.u32 %v331, 7
  %v333 = vsub.s32 0, %v332
  %v334 = vrot.slane %v329, %v333
  %vm336 = vcmask 130048
  %v338 = vsel %vm336, %v325, 0
  %v341 = vsel %vm336, %v326, 0
  %343 = vmatprep.subr.mxu0 0.0
  %344 = vmatpush1.msra.mxu0 %v327
  %345 = vmatprep.subr.mxu0 0.0
  %346 = vmatpush1.msra.mxu0 %v328
  %347 = vmatprep.subr.mxu0 0.0
  %348 = vmatpush1.msra.mxu0 0.0
  %349 = vmatprep.subr.mxu0 0.0
  %350 = vmatpush1.msra.mxu0 0.0
  %351 = vmatprep.subr.mxu0 0.0
  %352 = vmatpush1.msra.mxu0 0.0
  %353 = vmatprep.subr.mxu0 0.0
  %354 = vmatpush1.msra.mxu0 0.0
  %355 = vmatprep.subr.mxu0 0.0
  %356 = vmatpush1.msra.mxu0 0.0
  %357 = vmatprep.subr.mxu0 0.0
  %358 = vmatpush1.msra.mxu0 0.0
  %359 = vmatprep.subr.mxu0 0.0
  %360 = vmatpush1.msra.mxu0 0.0
  %361 = vmatprep.subr.mxu0 0.0
  %362 = vmatpush1.msra.mxu0 0.0
  %363 = vmatprep.subr.mxu0 0.0
  %364 = vmatpush1.msra.mxu0 0.0
  %365 = vmatprep.subr.mxu0 0.0
  %366 = vmatpush1.msra.mxu0 0.0
  %367 = vmatprep.subr.mxu0 0.0
  %368 = vmatpush1.msra.mxu0 0.0
  %369 = vmatprep.subr.mxu0 0.0
  %370 = vmatpush1.msra.mxu0 0.0
  %371 = vmatprep.subr.mxu0 0.0
  %372 = vmatpush1.msra.mxu0 0.0
  %373 = vmatprep.subr.mxu0 0.0
  %374 = vmatpush1.msra.mxu0 0.0
  %375 = vmatprep.subr.mxu0 0.0
  %376 = vmatpush1.msra.mxu0 0.0
  %377 = vmatprep.subr.mxu0 0.0
  %378 = vmatpush1.msra.mxu0 0.0
  %379 = vmatprep.subr.mxu0 0.0
  %380 = vmatpush1.msra.mxu0 0.0
  %381 = vmatprep.subr.mxu0 0.0
  %382 = vmatpush1.msra.mxu0 0.0
  %383 = vmatprep.subr.mxu0 0.0
  %384 = vmatpush1.msra.mxu0 0.0
  %385 = vmatprep.subr.mxu0 0.0
  %386 = vmatpush1.msra.mxu0 0.0
  %387 = vmatprep.subr.mxu0 0.0
  %388 = vmatpush1.msra.mxu0 0.0
  %389 = vmatprep.subr.mxu0 0.0
  %390 = vmatpush1.msra.mxu0 0.0
  %391 = vmatprep.subr.mxu0 0.0
  %392 = vmatpush1.msra.mxu0 0.0
  %393 = vmatprep.subr.mxu0 0.0
  %394 = vmatpush1.msra.mxu0 0.0
  %395 = vmatprep.subr.mxu0 0.0
  %396 = vmatpush1.msra.mxu0 0.0
  %397 = vmatprep.subr.mxu0 0.0
  %398 = vmatpush1.msra.mxu0 0.0
  %399 = vmatprep.subr.mxu0 0.0
  %400 = vmatpush1.msra.mxu0 0.0
  %401 = vmatprep.subr.mxu0 0.0
  %402 = vmatpush1.msra.mxu0 0.0
  %403 = vmatprep.subr.mxu0 0.0
  %404 = vmatpush1.msra.mxu0 0.0
  %405 = vmatprep.subr.mxu0 0.0
  %406 = vmatpush1.msra.mxu0 0.0
  %407 = vmatprep.mubr.f32.mxu0 0.0
  %408 = vmatmul.mubr.f32.gmra.mrb[0].mxu0 %v338
  %v409 = vpop.f32.mrb[0].mxu0
  %v410 = vadd.f32 %v334, %v409
  %v411 = vpop.f32.mrb[0].mxu0
  %412 = vmatprep.mubr.f32.mxu0 0.0
  %413 = vmatmul.mubr.f32.gmra.mrb[0].mxu0 %v341
  %v414 = vpop.f32.mrb[0].mxu0
  %v415 = vadd.f32 %v334, %v414
  %v416 = vpop.f32.mrb[0].mxu0
  %417 = vdwg.mxu0
  %418 = vst [vmem:[%s9] sm:$0xff] %v410
  %419 = vst [vmem:[%s9 + $0x8] sm:$0xff] %v415
  // Predicated region
  $region38: #{_lambda_.1} parent=0 // pred_check
    _
  $region39: #{_lambda_.1} parent=0 // pred_check_branch
    %421 = sbr.rel (0) target = $region41
  $region40: #{_lambda_.1} parent=0 // pred_region
    _
  $region41: #{_lambda_.1} parent=0 // pred_fallthru
    _
  // Predicated region
  $region42: #{_lambda_.1} parent=0 // pred_check
    _
  $region43: #{_lambda_.1} parent=0 // pred_check_branch
    %423 = sbr.rel (0) target = $region45
  $region44: #{_lambda_.1} parent=0 // pred_region
    _
  $region45: #{_lambda_.1} parent=0 // pred_fallthru
    _

</llo_original>
